<compile_context>
chip_gen: v6e
topology: v6e:2x2x1
jax: 0.10.0
libtpu: 0.0.40
codegen_flags: <defaults>
</compile_context>

<pallas_src>
import jax
import jax.numpy as jnp
from jax import lax
from jax.experimental import pallas as pl
from jax.experimental.pallas import tpu as pltpu

_LANE = 128
_SUBLANE = 8


def _round_up(x, m):
    return ((x + m - 1) // m) * m


def _vmem_capacity_bytes():
    """Physical VMEM per TensorCore; conservative (v7x-sized) fallback."""
    try:
        info = pltpu.get_tpu_info()
        for name in ("vmem_capacity_bytes", "vmem_bytes", "vmem_size_bytes"):
            v = getattr(info, name, None)
            if v:
                return int(v)
    except Exception:
        pass
    return 64 * 1024 * 1024


def _step_vmem_bytes(tq, td, C, x_itemsize):
    """Honest per-step VMEM: lane/sublane padding + double buffering everywhere."""
    c_sub = _round_up(C, _SUBLANE)
    c_lane = _round_up(C, _LANE)
    x_bytes = 2 * tq * td * x_itemsize          # streamed query tile, 2 buffers
    p_bytes = 2 * c_sub * td * x_itemsize       # protos: constant index_map is STILL 2-buffered
    psq_bytes = 2 * _SUBLANE * c_lane * 4       # (1, C) padded to (8, 128k)
    out_bytes = 2 * tq * c_lane * 4             # out last dim lane-padded to 128
    acc_bytes = tq * c_lane * 4                 # f32 accumulator scratch
    return x_bytes + p_bytes + psq_bytes + out_bytes + acc_bytes


def _make_kernel(precision):
    def kernel(x_ref, p_ref, psq_ref, o_ref, acc_ref):
        k = pl.program_id(1)

        @pl.when(k == 0)
        def _():
            acc_ref[...] = jnp.zeros_like(acc_ref)

        # Partial x . p^T over this d chunk: (tq, td) x (C, td) -> (tq, C).
        # Prototypes stay lane-dense; the MXU contracts the transposed RHS.
        acc_ref[...] += lax.dot_general(
            x_ref[...], p_ref[...],
            dimension_numbers=(((1,), (1,)), ((), ())),
            preferred_element_type=jnp.float32,
            precision=precision)

        @pl.when(k == pl.num_programs(1) - 1)
        def _():
            # dist = ||x||^2 - 2 x.p + ||p||^2; the ||x||^2 term is a per-row
            # constant, so softmax(-dist) == softmax(2 x.p - ||p||^2).
            logits = 2.0 * acc_ref[...] - psq_ref[...]
            m = jnp.max(logits, axis=1, keepdims=True)
            e = jnp.exp(logits - m)
            # exact division (approx recip would violate the row-sum check)
            o_ref[...] = (e / jnp.sum(e, axis=1, keepdims=True)).astype(o_ref.dtype)

    return kernel


def sub_squ_pallas(x, y_list, *, tq=None, td=None):
    """x: (q, C_in, H, W); y_list: list of (n_i, C_in, H, W). Returns (q, C) f32."""
    q = x.shape[0]
    x_flat = x.reshape(q, -1)                                   # row-major like .view
    if x_flat.dtype not in (jnp.float32, jnp.bfloat16):
        x_flat = x_flat.astype(jnp.float32)
    compute_dtype = x_flat.dtype                                # bf16 streams as bf16 (no extra HBM pass)
    d = x_flat.shape[1]

    # Class prototypes (tiny plain-JAX glue; mean in f32 for accuracy).
    protos_f32 = jnp.concatenate(
        [yi.reshape(yi.shape[0], -1).astype(jnp.float32).mean(0, keepdims=True)
         for yi in y_list], axis=0)                             # (C, d)
    C = protos_f32.shape[0]
    p_sq = jnp.sum(protos_f32 * protos_f32, axis=1)[None, :].astype(jnp.float32)  # (1, C)
    protos = protos_f32.astype(compute_dtype)                   # lane-dense (C, d)

    itemsize = jnp.dtype(compute_dtype).itemsize

    # --- generation-aware VMEM budget (v7x: 64 MiB/TC; v5e/v6e: 128 MiB) ---
    vmem_cap = _vmem_capacity_bytes()
    vmem_limit = min(vmem_cap * 3 // 4, 112 * 1024 * 1024)      # ~48 MiB v7x, ~96 MiB v5e/v6e
    budget = int(vmem_limit * 0.9)                              # headroom for compiler scratch

    # --- query tile: big tiles amortize per-step overhead (kernel is HBM-bound on x) ---
    tq_req = 512 if tq is None else int(tq)
    tq_eff = max(_SUBLANE, min(_round_up(tq_req, _SUBLANE), _round_up(q, _SUBLANE)))
    if q > _SUBLANE:
        # keep >= 2 query tiles so v7x's second TensorCore has work
        tq_eff = min(tq_eff, max(_SUBLANE, _round_up((q + 1) // 2, _SUBLANE)))

    # --- d chunk: full d if it fits the budget, else a chunked reduction axis ---
    td_eff = _round_up(d, _LANE) if td is None else max(_LANE, _round_up(min(int(td), d), _LANE))
    while _step_vmem_bytes(tq_eff, td_eff, C, itemsize) > budget and td_eff > _LANE:
        td_eff = max(_LANE, _round_up(td_eff // 2, _LANE))
    while _step_vmem_bytes(tq_eff, td_eff, C, itemsize) > budget and tq_eff > _SUBLANE:
        tq_eff = max(_SUBLANE, _round_up(tq_eff // 2, _SUBLANE))
    assert _step_vmem_bytes(tq_eff, td_eff, C, itemsize) <= budget, (
        "feature/class dims too large for VMEM even at the minimum tile")

    # Zero-pad q and d (zero padding does not change x.p or ||p||^2).
    q_pad = _round_up(q, tq_eff)
    d_pad = _round_up(d, td_eff)
    if q_pad != q or d_pad != d:
        x_flat = jnp.pad(x_flat, ((0, q_pad - q), (0, d_pad - d)))
    if d_pad != d:
        protos = jnp.pad(protos, ((0, 0), (0, d_pad - d)))

    # HIGHEST is negligible while the MXU N-dim (classes) is tiny; drop to HIGH
    # once C grows to >= 128 and the matmul starts to matter.
    precision = lax.Precision.HIGHEST if C < 128 else lax.Precision.HIGH

    grid = (q_pad // tq_eff, d_pad // td_eff)
    out = pl.pallas_call(
        _make_kernel(precision),
        out_shape=jax.ShapeDtypeStruct((q_pad, C), jnp.float32),
        grid_spec=pltpu.PrefetchScalarGridSpec(
            num_scalar_prefetch=0,
            grid=grid,
            in_specs=[
                pl.BlockSpec((tq_eff, td_eff), lambda i, k: (i, k)),   # streamed query tile
                pl.BlockSpec((C, td_eff), lambda i, k: (0, k)),        # lane-dense protos chunk
                pl.BlockSpec((1, C), lambda i, k: (0, 0)),             # ||p||^2: VMEM-resident
            ],
            out_specs=pl.BlockSpec((tq_eff, C), lambda i, k: (i, 0)),
            scratch_shapes=[pltpu.VMEM((tq_eff, C), jnp.float32)],     # x.p accumulator
        ),
        compiler_params=pltpu.CompilerParams(
            dimension_semantics=("parallel", "arbitrary"),             # megacore over query tiles
            vmem_limit_bytes=int(vmem_limit),
        ),
    )(x_flat, protos, p_sq)
    return out[:q]

    # TODO(synk): optionally pad classes to a 128-lane multiple (p_sq=+inf on pads)
    # if C ever grows large enough for the masked output store / MXU N-fill to matter.


def _reference(x, y_list):
    q = x.shape[0]
    xf = x.reshape(q, -1).astype(jnp.float32)
    protos = jnp.concatenate(
        [yi.reshape(yi.shape[0], -1).astype(jnp.float32).mean(0, keepdims=True)
         for yi in y_list], axis=0)
    dist = jnp.sum((xf[:, None, :] - protos[None, :, :]) ** 2, axis=-1)
    return jax.nn.softmax(-dist, axis=1)


if __name__ == "__main__":
    key = jax.random.PRNGKey(0)
    query_num, class_num = 16, 4
    C_in, H, W = 4, 16, 16          # d = 4*16*16 = 1024
    n_shot = 5

    kx, *kys = jax.random.split(key, 1 + class_num)
    x = jax.random.normal(kx, (query_num, C_in, H, W), dtype=jnp.float32)
    y_list = [jax.random.normal(kys[i], (n_shot, C_in, H, W), dtype=jnp.float32)
              for i in range(class_num)]

    ref = _reference(x, y_list)

    # Path 1: small explicit tiles -> exercises both grid axes (2 query tiles x
    # 2 d-chunks: accumulator init / epilogue / megacore split).
    out_chunked = jax.block_until_ready(sub_squ_pallas(x, y_list, tq=8, td=512))
    # Path 2: defaults -> auto tile sizing (full-d chunk at this size).
    out_default = jax.block_until_ready(sub_squ_pallas(x, y_list))

    for out in (out_chunked, out_default):
        assert out.shape == (query_num, class_num)
        assert jnp.allclose(out.sum(axis=1), 1.0, atol=1e-5), "rows must sum to 1"
        # kernel uses the (shift-invariant) 2*x.p - ||p||^2 logits, reference sums
        # (x-p)^2 directly over d=1024 in f32 -> allow small f32 slack.
        assert jnp.allclose(out, ref, atol=2e-3, rtol=1e-3), "mismatch vs reference"

    print("KERNEL_OK")
</pallas_src>

<mosaic_0001>
module attributes {stable_mosaic.version = 11 : i64} {
  func.func @kernel(%arg0: i32, %arg1: i32, %arg2: memref<8x512xf32, #tpu.memory_space<vmem>>, %arg3: memref<4x512xf32, #tpu.memory_space<vmem>>, %arg4: memref<1x4xf32, #tpu.memory_space<vmem>>, %arg5: memref<8x4xf32, #tpu.memory_space<vmem>>, %arg6: memref<8x4xf32, #tpu.memory_space<vmem>>) attributes {dimension_semantics = [#tpu.dimension_semantics<parallel>, #tpu.dimension_semantics<arbitrary>], iteration_bounds = array<i64: 2, 2>, scalar_prefetch = 0 : i64, scratch_operands = 1 : i64, tpu.core_type = #tpu.core_type<tc>, window_params = [{transform_indices = @transform_0, window_bounds = array<i64: 8, 512>}, {transform_indices = @transform_1, window_bounds = array<i64: 4, 512>}, {pipeline_mode = #tpu.pipeline_mode<synchronous>, transform_indices = @transform_2, window_bounds = array<i64: 1, 4>}, {transform_indices = @transform_3, window_bounds = array<i64: 8, 4>}]} {
    %c0_i32 = arith.constant 0 : i32
    %0 = arith.cmpi eq, %arg1, %c0_i32 : i32
    %1 = arith.extui %0 : i1 to i32
    %c0_i32_0 = arith.constant 0 : i32
    %2 = arith.cmpi ne, %1, %c0_i32_0 : i32
    scf.if %2 {
      %cst_9 = arith.constant 0.000000e+00 : f32
      %12 = vector.broadcast %cst_9 : f32 to vector<8x4xf32>
      %c0_10 = arith.constant 0 : index
      %c0_11 = arith.constant 0 : index
      %13 = vector.load %arg6[%c0_10, %c0_11] : memref<8x4xf32, #tpu.memory_space<vmem>>, vector<8x4xf32>
      tpu.vector_store %arg6[%c0_10, %c0_11], %12 {strides = array<i32>} : memref<8x4xf32, #tpu.memory_space<vmem>>, vector<8x4xf32>,
    } else {
    }
    %c0 = arith.constant 0 : index
    %c0_1 = arith.constant 0 : index
    %3 = vector.load %arg6[%c0, %c0_1] : memref<8x4xf32, #tpu.memory_space<vmem>>, vector<8x4xf32>
    %c0_2 = arith.constant 0 : index
    %c0_3 = arith.constant 0 : index
    %4 = vector.load %arg2[%c0_2, %c0_3] : memref<8x512xf32, #tpu.memory_space<vmem>>, vector<8x512xf32>
    %c0_4 = arith.constant 0 : index
    %c0_5 = arith.constant 0 : index
    %5 = vector.load %arg3[%c0_4, %c0_5] : memref<4x512xf32, #tpu.memory_space<vmem>>, vector<4x512xf32>
    %cst = arith.constant dense<0.000000e+00> : vector<8x4xf32>
    %6 = tpu.matmul %4, %5, %cst {dimension_numbers = #tpu.dot_dimension_numbers<[1], [1], [0], [0], [0, 0, 1, 0], [], []>, precision = #tpu.contract_precision<fp32>} : vector<8x512xf32>, vector<4x512xf32>, vector<8x4xf32> -> vector<8x4xf32>
    %7 = arith.addf %3, %6 : vector<8x4xf32>
    %c0_6 = arith.constant 0 : index
    %c0_7 = arith.constant 0 : index
    %8 = vector.load %arg6[%c0_6, %c0_7] : memref<8x4xf32, #tpu.memory_space<vmem>>, vector<8x4xf32>
    tpu.vector_store %arg6[%c0_6, %c0_7], %7 {strides = array<i32>} : memref<8x4xf32, #tpu.memory_space<vmem>>, vector<8x4xf32>,
    %c1_i32 = arith.constant 1 : i32
    %9 = arith.cmpi eq, %arg1, %c1_i32 : i32
    %10 = arith.extui %9 : i1 to i32
    %c0_i32_8 = arith.constant 0 : i32
    %11 = arith.cmpi ne, %10, %c0_i32_8 : i32
    scf.if %11 {
      %c0_9 = arith.constant 0 : index
      %c0_10 = arith.constant 0 : index
      %12 = vector.load %arg6[%c0_9, %c0_10] : memref<8x4xf32, #tpu.memory_space<vmem>>, vector<8x4xf32>
      %cst_11 = arith.constant 2.000000e+00 : f32
      %13 = vector.broadcast %cst_11 : f32 to vector<8x4xf32>
      %14 = arith.mulf %13, %12 : vector<8x4xf32>
      %c0_12 = arith.constant 0 : index
      %c0_13 = arith.constant 0 : index
      %15 = vector.load %arg4[%c0_12, %c0_13] : memref<1x4xf32, #tpu.memory_space<vmem>>, vector<1x4xf32>
      %16 = vector.broadcast %15 : vector<1x4xf32> to vector<8x4xf32>
      %17 = arith.subf %14, %16 : vector<8x4xf32>
      %cst_14 = arith.constant dense<0xFF800000> : vector<8xf32>
      %18 = vector.multi_reduction <maximumf>, %17, %cst_14 [1] : vector<8x4xf32> to vector<8xf32>
      %19 = vector.shape_cast %18 : vector<8xf32> to vector<8x1xf32>
      %20 = vector.broadcast %19 : vector<8x1xf32> to vector<8x4xf32>
      %21 = arith.subf %17, %20 : vector<8x4xf32>
      %22 = math.exp %21 : vector<8x4xf32>
      %cst_15 = arith.constant dense<0.000000e+00> : vector<8xf32>
      %23 = vector.multi_reduction <add>, %22, %cst_15 [1] : vector<8x4xf32> to vector<8xf32>
      %24 = vector.shape_cast %23 : vector<8xf32> to vector<8x1xf32>
      %25 = vector.broadcast %24 : vector<8x1xf32> to vector<8x4xf32>
      %26 = arith.divf %22, %25 : vector<8x4xf32>
      %c0_16 = arith.constant 0 : index
      %c0_17 = arith.constant 0 : index
      %27 = vector.load %arg5[%c0_16, %c0_17] : memref<8x4xf32, #tpu.memory_space<vmem>>, vector<8x4xf32>
      tpu.vector_store %arg5[%c0_16, %c0_17], %26 {strides = array<i32>} : memref<8x4xf32, #tpu.memory_space<vmem>>, vector<8x4xf32>,
    } else {
    }
    return
  }
  func.func @transform_0(%arg0: i32, %arg1: i32) -> (i32, i32) {
    %c0_i32 = arith.constant 0 : i32
    return %arg0, %arg1 : i32, i32
  }
  func.func @transform_1(%arg0: i32, %arg1: i32) -> (i32, i32) {
    %c0_i32 = arith.constant 0 : i32
    %c0_i32_0 = arith.constant 0 : i32
    return %c0_i32, %arg1 : i32, i32
  }
  func.func @transform_2(%arg0: i32, %arg1: i32) -> (i32, i32) {
    %c0_i32 = arith.constant 0 : i32
    %c0_i32_0 = arith.constant 0 : i32
    %c0_i32_1 = arith.constant 0 : i32
    return %c0_i32, %c0_i32_0 : i32, i32
  }
  func.func @transform_3(%arg0: i32, %arg1: i32) -> (i32, i32) {
    %c0_i32 = arith.constant 0 : i32
    %c0_i32_0 = arith.constant 0 : i32
    return %arg0, %c0_i32 : i32, i32
  }
}

</mosaic_0001>

<llo_original>
// kernel: tpu_custom_call.1
$region0: #{tpu_custom_call.1}
  #allocation0 [shape = 'u32[]', space=smem, size = 0x4, offset = 0x4, fixed_abs, tag = 'smem constant byte address 0x4 - core index']
  #allocation1 [shape = 'u32[144,128]{1,0:T(1,128)}', space=vmem, size = 0x12000, scoped, tag = 'internal scratch']
  #allocation2 [shape = 'f32[8,4]{1,0:T(8,128)}', space=vmem, size = 0x1000, scoped, tag = 'scratch operand']
  %s0 = inlined_call_operand.hbm [shape: f32[16,1024], index: 0, kind: input, shape index: {}]
  %s1 = inlined_call_operand.hbm [shape: f32[4,1024], index: 1, kind: input, shape index: {}]
  %s2 = inlined_call_operand.vmem [shape: f32[1,4], index: 2, kind: input, shape index: {}]
  %s3 = inlined_call_operand.vmem [shape: f32[16,4], index: 3, kind: output, shape index: {}]
  %s4 = sld [smem:[#allocation0]]
  $region61: #{tpu_custom_call.1} parent=0
    _
  %s6 = ssub.s32 1, %s4
  %s7 = scalar_select 0, %s6, %s4
  $region1: #{tpu_custom_call.1} parent=0
    #allocation3 [shape = 'u8[32768]{0}', space=vmem, size = 0x8000, scoped, tag = 'input window, operand 0']
    #allocation4 [shape = 's32[2]{0}', space=sflag, size = 0x8, scoped, tag = 'scoped memory for tpu_custom_call.1']
    #allocation5 [shape = 'u8[16384]{0}', space=vmem, size = 0x4000, scoped, tag = 'input window, operand 1']
    #allocation6 [shape = 's32[2]{0}', space=sflag, size = 0x8, scoped, tag = 'scoped memory for tpu_custom_call.1']
    %8 = vsyncpa [#allocation4], 0
    %s9 = scalar_lea.sflag [#allocation4], 1
    %10 = vsyncpa %s9, 0
    %11 = vsyncpa [#allocation6], 0
    %s12 = scalar_lea.sflag [#allocation6], 1
    %13 = vsyncpa %s12, 0
    loop: start=0, step=1, limit=6
    $region2: #{tpu_custom_call.1} parent=1 // loop_pre_header
      _
    $region3: #{tpu_custom_call.1} parent=1 // loop_header
      %s15 = sphi 0, %s19
      %p16 = scmp.ge.s32.totalorder %s15, 6
      %s22 = sphi 0, %s34
      %s23 = sphi 0, %s30
      %s24 = sphi 0, %s22
      %s25 = sphi 0, %s23
      %s26 = sphi 0, %s24
      %s27 = sphi 0, %s25
      %s39 = sphi 0, %s41
      %s42 = sphi 0, %s39
      %s43 = sphi 0, %s42
      %s59 = sphi 0, %s43
      %s65 = sphi 0, %s67
      %s68 = sphi 0, %s65
      %s69 = sphi 0, %s68
      %s85 = sphi 0, %s69
      %s89 = sphi 0, %s89
      %s91 = sphi 0, %s89
      %s92 = sphi 0, %s91
      %s106 = sphi 0, %s92
      %s112 = sphi 0, %s114
      %s115 = sphi 0, %s112
      %s116 = sphi 0, %s115
      %s132 = sphi 0, %s116
    $region4: #{tpu_custom_call.1} parent=1 // loop_header_branch
      %18 = sbr.rel (%p16) target = $region8
    $region5: #{tpu_custom_call.1} parent=1 // loop_body
      %s20 = ssub.s32 %s15, 1
      %s21 = ssub.s32 %s15, 2
      %s28 = sadd.s32 1, %s23
      %p29 = scmp.ge.s32.totalorder %s28, 2
      %s30 = scalar_select %p29, 0, %s28
      %s31 = sadd.s32 1, %s22
      %s32 = scalar_select %p29, %s31, %s22
      %p33 = scmp.ge.s32.totalorder %s32, 2
      %s34 = scalar_select %p33, 0, %s32
      %s35 = ssub.s32 %s22, %s34
      %s36 = ssub.s32 %s23, %s30
      %s37 = sor.u32 %s35, %s36
      %p38 = scmp.eq.s32.totalorder %s37, 0
      %s40 = sadd.s32 %s39, 1
      %s41 = scalar_select %p38, %s39, %s40
      %p44 = pneg %p38
      %p45 = scmp.eq.s32.totalorder %s15, 3
      %p46 = por %p44, %p45
      %p47 = scmp.ne.s32.totalorder %s39, %s42
      %p48 = scmp.eq.s32.totalorder %s15, 0
      %p49 = por %p47, %p48
      %p50 = scmp.ne.s32.totalorder %s39, %s42
      %p51 = scmp.eq.s32.totalorder %s20, 3
      %p52 = por %p50, %p51
      %p53 = scmp.ne.s32.totalorder %s42, %s43
      %p54 = scmp.eq.s32.totalorder %s20, 0
      %p55 = por %p53, %p54
      %p56 = scmp.ne.s32.totalorder %s42, %s43
      %p57 = scmp.eq.s32.totalorder %s21, 3
      %p58 = por %p56, %p57
      %p60 = scmp.ne.s32.totalorder %s43, %s59
      %p61 = scmp.eq.s32.totalorder %s21, 0
      %p62 = por %p60, %p61
      %s63 = ssub.s32 %s23, %s30
      %p64 = scmp.eq.s32.totalorder %s63, 0
      %s66 = sadd.s32 %s65, 1
      %s67 = scalar_select %p64, %s65, %s66
      %p70 = pneg %p64
      %p71 = scmp.eq.s32.totalorder %s15, 3
      %p72 = por %p70, %p71
      %p73 = scmp.ne.s32.totalorder %s65, %s68
      %p74 = scmp.eq.s32.totalorder %s15, 0
      %p75 = por %p73, %p74
      %p76 = scmp.ne.s32.totalorder %s65, %s68
      %p77 = scmp.eq.s32.totalorder %s20, 3
      %p78 = por %p76, %p77
      %p79 = scmp.ne.s32.totalorder %s68, %s69
      %p80 = scmp.eq.s32.totalorder %s20, 0
      %p81 = por %p79, %p80
      %p82 = scmp.ne.s32.totalorder %s68, %s69
      %p83 = scmp.eq.s32.totalorder %s21, 3
      %p84 = por %p82, %p83
      %p86 = scmp.ne.s32.totalorder %s69, %s85
      %p87 = scmp.eq.s32.totalorder %s21, 0
      %p88 = por %p86, %p87
      %s90 = sadd.s32 %s89, 1
      %p93 = scmp.eq.s32.totalorder %s15, 3
      %p94 = scmp.ne.s32.totalorder %s89, %s91
      %p95 = scmp.eq.s32.totalorder %s15, 0
      %p96 = por %p94, %p95
      %p97 = scmp.ne.s32.totalorder %s89, %s91
      %p98 = scmp.eq.s32.totalorder %s20, 3
      %p99 = por %p97, %p98
      %p100 = scmp.ne.s32.totalorder %s91, %s92
      %p101 = scmp.eq.s32.totalorder %s20, 0
      %p102 = por %p100, %p101
      %p103 = scmp.ne.s32.totalorder %s91, %s92
      %p104 = scmp.eq.s32.totalorder %s21, 3
      %p105 = por %p103, %p104
      %p107 = scmp.ne.s32.totalorder %s92, %s106
      %p108 = scmp.eq.s32.totalorder %s21, 0
      %p109 = por %p107, %p108
      %s110 = ssub.s32 %s22, %s34
      %p111 = scmp.eq.s32.totalorder %s110, 0
      %s113 = sadd.s32 %s112, 1
      %s114 = scalar_select %p111, %s112, %s113
      %p117 = pneg %p111
      %p118 = scmp.eq.s32.totalorder %s15, 3
      %p119 = por %p117, %p118
      %p120 = scmp.ne.s32.totalorder %s112, %s115
      %p121 = scmp.eq.s32.totalorder %s15, 0
      %p122 = por %p120, %p121
      %p123 = scmp.ne.s32.totalorder %s112, %s115
      %p124 = scmp.eq.s32.totalorder %s20, 3
      %p125 = por %p123, %p124
      %p126 = scmp.ne.s32.totalorder %s115, %s116
      %p127 = scmp.eq.s32.totalorder %s20, 0
      %p128 = por %p126, %p127
      %p129 = scmp.ne.s32.totalorder %s115, %s116
      %p130 = scmp.eq.s32.totalorder %s21, 3
      %p131 = por %p129, %p130
      %p133 = scmp.ne.s32.totalorder %s116, %s132
      %p134 = scmp.eq.s32.totalorder %s21, 0
      %p135 = por %p133, %p134
      %p136 = scmp.le.s32.totalorder 1, %s15
      %p137 = scmp.lt.s32.totalorder %s15, 5
      %p138 = pnand %p136, %p137
      %p139 = pneg %p138
      // Predicated region
      $region9: #{tpu_custom_call.1} parent=5 // pred_check
        _
      $region10: #{tpu_custom_call.1} parent=5 // pred_check_branch
        %141 = sbr.rel (%p138) target = $region12
      $region11: #{tpu_custom_call.1} parent=5 // pred_region
        %s142 = ssub.s32 %s15, 1
        // Predicated region
        $region13: #{tpu_custom_call.1} parent=11 // pred_check
          %p143 = pneg %p102
        $region14: #{tpu_custom_call.1} parent=11 // pred_check_branch
          %145 = sbr.rel (%p143) target = $region16
        $region15: #{tpu_custom_call.1} parent=11 // pred_region
          _
        $region16: #{tpu_custom_call.1} parent=11 // pred_fallthru
          _
      $region12: #{tpu_custom_call.1} parent=5 // pred_fallthru
        _
      %p146 = scmp.lt.s32.totalorder %s15, 4
      // Predicated region
      $region17: #{tpu_custom_call.1} parent=5 // pred_check
        %p147 = pneg %p146
      $region18: #{tpu_custom_call.1} parent=5 // pred_check_branch
        %149 = sbr.rel (%p147) target = $region20
      $region19: #{tpu_custom_call.1} parent=5 // pred_region
        // Predicated region
        $region21: #{tpu_custom_call.1} parent=19 // pred_check
          %p150 = pneg %p49
        $region22: #{tpu_custom_call.1} parent=19 // pred_check_branch
          %152 = sbr.rel (%p150) target = $region24
        $region23: #{tpu_custom_call.1} parent=19 // pred_region
          %s153 = sand.u32 %s39, 1
          %s154 = scalar_lea.sflag [#allocation4], %s153
          %s155 = sand.u32 %s39, 1
          %s156 = smul.addr %s155, 32
          %s157 = scalar_lea.vmem [#allocation3], %s156
          %s158 = smul.u32 4, %s23
          %s160 = ssub.s32 512, 512
          %161 = vsyncadd %s154, %s160
          %s162 = smul.addr %s22, 8
          %s163 = sadd.s32 %s158, %s162
          %s164 = smul.addr %s163, 128
          %s165 = scalar_lea.hbm %s0, %s164
          %s167 = sshll.u32 %s157, 4
          %s168 = int_to_ptr.vmem [resolvable:$true] %s167
          %170 = dma.hbm_to_vmem [thread:$0]  %s165, 512, %s168, %s154
        $region24: #{tpu_custom_call.1} parent=19 // pred_fallthru
          _
        // Predicated region
        $region25: #{tpu_custom_call.1} parent=19 // pred_check
          %p171 = pneg %p75
        $region26: #{tpu_custom_call.1} parent=19 // pred_check_branch
          %173 = sbr.rel (%p171) target = $region28
        $region27: #{tpu_custom_call.1} parent=19 // pred_region
          %s174 = sand.u32 %s65, 1
          %s175 = scalar_lea.sflag [#allocation6], %s174
          %s176 = sand.u32 %s65, 1
          %s177 = smul.addr %s176, 16
          %s178 = scalar_lea.vmem [#allocation5], %s177
          %s179 = smul.u32 4, %s23
          %s181 = ssub.s32 256, 256
          %182 = vsyncadd %s175, %s181
          %s183 = smul.addr %s179, 64
          %s184 = scalar_lea.hbm %s1, %s183
          %s186 = sshll.u32 %s178, 4
          %s187 = int_to_ptr.vmem [resolvable:$true] %s186
          %189 = dma.hbm_to_vmem [thread:$0]  %s184, 256, %s187, %s175
        $region28: #{tpu_custom_call.1} parent=19 // pred_fallthru
          _
      $region20: #{tpu_custom_call.1} parent=5 // pred_fallthru
        _
      %p190 = scmp.le.s32.totalorder 1, %s15
      %p191 = scmp.lt.s32.totalorder %s15, 5
      %p192 = pnand %p190, %p191
      %p193 = pneg %p192
      // Predicated region
      $region29: #{tpu_custom_call.1} parent=5 // pred_check
        _
      $region30: #{tpu_custom_call.1} parent=5 // pred_check_branch
        %195 = sbr.rel (%p192) target = $region32
      $region31: #{tpu_custom_call.1} parent=5 // pred_region
        %s196 = ssub.s32 %s15, 1
        %s197 = sand.u32 %s42, 1
        %s198 = scalar_lea.sflag [#allocation4], %s197
        %s199 = sand.u32 %s42, 1
        %s200 = smul.addr %s199, 32
        %s201 = scalar_lea.vmem [#allocation3], %s200
        // Predicated region
        $region33: #{tpu_custom_call.1} parent=31 // pred_check
          %p202 = pneg %p55
        $region34: #{tpu_custom_call.1} parent=31 // pred_check_branch
          %204 = sbr.rel (%p202) target = $region36
        $region35: #{tpu_custom_call.1} parent=31 // pred_region
          %205 = dma.done %s198, 512
        $region36: #{tpu_custom_call.1} parent=31 // pred_fallthru
          _
        %s206 = sand.u32 %s68, 1
        %s207 = scalar_lea.sflag [#allocation6], %s206
        %s208 = sand.u32 %s68, 1
        %s209 = smul.addr %s208, 16
        %s210 = scalar_lea.vmem [#allocation5], %s209
        // Predicated region
        $region37: #{tpu_custom_call.1} parent=31 // pred_check
          %p211 = pneg %p81
        $region38: #{tpu_custom_call.1} parent=31 // pred_check_branch
          %213 = sbr.rel (%p211) target = $region40
        $region39: #{tpu_custom_call.1} parent=31 // pred_region
          %214 = dma.done %s207, 256
        $region40: #{tpu_custom_call.1} parent=31 // pred_fallthru
          _
        %s215 = sand.u32 %s42, 1
        %s216 = scalar_lea.sflag [#allocation4], %s215
        %s217 = sand.u32 %s42, 1
        %s218 = smul.addr %s217, 32
        %s219 = scalar_lea.vmem [#allocation3], %s218
        %p220 = pneg %p55
        %p221 = pneg %p52
        %s222 = sand.u32 %s68, 1
        %s223 = scalar_lea.sflag [#allocation6], %s222
        %s224 = sand.u32 %s68, 1
        %s225 = smul.addr %s224, 16
        %s226 = scalar_lea.vmem [#allocation5], %s225
        %p227 = pneg %p81
        %p228 = pneg %p78
        %p229 = pneg %p102
        %p230 = pneg %p99
        %p231 = pneg %p128
        %p232 = pneg %p125
        %p233 = scmp.lt.s32.totalorder %s24, 1
        %s234 = scalar_select %p233, %s24, 1
        %s235 = smul.addr %s234, 8
        %s236 = scalar_lea.vmem %s3, %s235
        %s237 = smul.u32 4, %s25
        %s238 = smul.u32 4, %s25
        %p239 = scmp.lt.s32.totalorder %s24, 1
        %s240 = scalar_select %p239, %s24, 1
        %s241 = smul.addr %s240, 8
        %s242 = scalar_lea.vmem %s3, %s241
        %p243 = scmp.eq.s32.totalorder %s25, 0
        // Predicated region
        $region41: #{tpu_custom_call.1} parent=31 // pred_check
          %p244 = pneg %p243
        $region42: #{tpu_custom_call.1} parent=31 // pred_check_branch
          %246 = sbr.rel (%p244) target = $region44
        $region43: #{tpu_custom_call.1} parent=31 // pred_region
          %vm247 = vcmask 31744
          %248 = vst.msk [vmem:[#allocation2] sm:$0xff] %vm247, 0.0
        $region44: #{tpu_custom_call.1} parent=31 // pred_fallthru
          _
        %v249 = vld [vmem:[#allocation2] sm:$0xff]
        %v250 = vld [vmem:[%s201] sm:$0xff]
        %v251 = vld [vmem:[%s201 + $0x8] sm:$0xff]
        %v252 = vld [vmem:[%s201 + $0x10] sm:$0xff]
        %v253 = vld [vmem:[%s201 + $0x18] sm:$0xff]
        %v254 = vld [vmem:[%s210] sm:$0xff]
        %v255 = vld [vmem:[%s210 + $0x8] sm:$0xff]
        %v258 = vcombine.high %v254, %v254
        %v259 = vcombine.high %v255, %v255
        %262 = vmatprep.subr.mxu0 0.0
        %263 = vmatpush1.xpose.msra.mxu0 0.0
        %264 = vmatprep.subr.mxu0 0.0
        %265 = vmatpush1.xpose.msra.mxu0 0.0
        %266 = vmatprep.subr.mxu0 0.0
        %267 = vmatpush1.xpose.msra.mxu0 0.0
        %268 = vmatprep.subr.mxu0 0.0
        %269 = vmatpush1.xpose.msra.mxu0 0.0
        %270 = vmatprep.subr.mxu0 0.0
        %271 = vmatpush1.xpose.msra.mxu0 0.0
        %272 = vmatprep.subr.mxu0 0.0
        %273 = vmatpush1.xpose.msra.mxu0 0.0
        %274 = vmatprep.subr.mxu0 0.0
        %275 = vmatpush1.xpose.msra.mxu0 0.0
        %276 = vmatprep.subr.mxu0 0.0
        %277 = vmatpush1.xpose.msra.mxu0 0.0
        %278 = vmatprep.subr.mxu0 0.0
        %279 = vmatpush1.xpose.msra.mxu0 0.0
        %280 = vmatprep.subr.mxu0 0.0
        %281 = vmatpush1.xpose.msra.mxu0 0.0
        %282 = vmatprep.subr.mxu0 0.0
        %283 = vmatpush1.xpose.msra.mxu0 0.0
        %284 = vmatprep.subr.mxu0 0.0
        %285 = vmatpush1.xpose.msra.mxu0 0.0
        %286 = vmatprep.subr.mxu0 0.0
        %287 = vmatpush1.xpose.msra.mxu0 0.0
        %288 = vmatprep.subr.mxu0 0.0
        %289 = vmatpush1.xpose.msra.mxu0 0.0
        %290 = vmatprep.subr.mxu0 0.0
        %291 = vmatpush1.xpose.msra.mxu0 0.0
        %v292 = vand.u32 %v258, 4294901760
        %293 = vmatprep.subr.mxu0 %v292
        %v294 = vand.u32 %v254, 4294901760
        %295 = vmatpush1.xpose.msra.mxu0 %v294
        %296 = vmatprep.subr.mxu0 0.0
        %297 = vmatpush2.xpose.msra.mxu0 0.0
        %298 = vmatprep.subr.mxu0 0.0
        %299 = vmatpush2.xpose.msra.mxu0 0.0
        %300 = vmatprep.subr.mxu0 0.0
        %301 = vmatpush2.xpose.msra.mxu0 0.0
        %302 = vmatprep.subr.mxu0 0.0
        %303 = vmatpush2.xpose.msra.mxu0 0.0
        %304 = vmatprep.subr.mxu0 0.0
        %305 = vmatpush2.xpose.msra.mxu0 0.0
        %306 = vmatprep.subr.mxu0 0.0
        %307 = vmatpush2.xpose.msra.mxu0 0.0
        %308 = vmatprep.subr.mxu0 0.0
        %309 = vmatpush2.xpose.msra.mxu0 0.0
        %310 = vmatprep.subr.mxu0 0.0
        %311 = vmatpush2.xpose.msra.mxu0 0.0
        %312 = vmatprep.subr.mxu0 0.0
        %313 = vmatpush2.xpose.msra.mxu0 0.0
        %314 = vmatprep.subr.mxu0 0.0
        %315 = vmatpush2.xpose.msra.mxu0 0.0
        %316 = vmatprep.subr.mxu0 0.0
        %317 = vmatpush2.xpose.msra.mxu0 0.0
        %318 = vmatprep.subr.mxu0 0.0
        %319 = vmatpush2.xpose.msra.mxu0 0.0
        %320 = vmatprep.subr.mxu0 0.0
        %321 = vmatpush2.xpose.msra.mxu0 0.0
        %322 = vmatprep.subr.mxu0 0.0
        %323 = vmatpush2.xpose.msra.mxu0 0.0
        %324 = vmatprep.subr.mxu0 0.0
        %325 = vmatpush2.xpose.msra.mxu0 0.0
        %326 = vmatprep.subr.mxu0 0.0
        %327 = vmatpush2.xpose.msra.mxu0 0.0
        %v328 = vand.u32 %v251, 4294901760
        %v329 = vsub.f32 %v251, %v328
        %v330 = vand.u32 %v329, 4294901760
        %v331 = vsub.f32 %v329, %v330
        %v332 = vand.u32 %v331, 4294901760
        %333 = vmatprep.mubr.f32.mxu0 %v332
        %v334 = vand.u32 %v250, 4294901760
        %v335 = vsub.f32 %v250, %v334
        %v336 = vand.u32 %v335, 4294901760
        %v337 = vsub.f32 %v335, %v336
        %v338 = vand.u32 %v337, 4294901760
        %339 = vmatmul.mubr.f32.gmra.mxu0 %v338
        %v340 = vpop.f32.mrf.mxu0
        %v341 = vadd.f32 0.0, %v340
        %v342 = vpop.f32.mrf.mxu0
        %343 = vdwg.mxu0
        %344 = vmatprep.subr.mxu0 0.0
        %345 = vmatpush1.xpose.msra.mxu0 0.0
        %346 = vmatprep.subr.mxu0 0.0
        %347 = vmatpush1.xpose.msra.mxu0 0.0
        %348 = vmatprep.subr.mxu0 0.0
        %349 = vmatpush1.xpose.msra.mxu0 0.0
        %350 = vmatprep.subr.mxu0 0.0
        %351 = vmatpush1.xpose.msra.mxu0 0.0
        %352 = vmatprep.subr.mxu0 0.0
        %353 = vmatpush1.xpose.msra.mxu0 0.0
        %354 = vmatprep.subr.mxu0 0.0
        %355 = vmatpush1.xpose.msra.mxu0 0.0
        %356 = vmatprep.subr.mxu0 0.0
        %357 = vmatpush1.xpose.msra.mxu0 0.0
        %358 = vmatprep.subr.mxu0 0.0
        %359 = vmatpush1.xpose.msra.mxu0 0.0
        %360 = vmatprep.subr.mxu0 0.0
        %361 = vmatpush1.xpose.msra.mxu0 0.0
        %362 = vmatprep.subr.mxu0 0.0
        %363 = vmatpush1.xpose.msra.mxu0 0.0
        %364 = vmatprep.subr.mxu0 0.0
        %365 = vmatpush1.xpose.msra.mxu0 0.0
        %366 = vmatprep.subr.mxu0 0.0
        %367 = vmatpush1.xpose.msra.mxu0 0.0
        %368 = vmatprep.subr.mxu0 0.0
        %369 = vmatpush1.xpose.msra.mxu0 0.0
        %370 = vmatprep.subr.mxu0 0.0
        %371 = vmatpush1.xpose.msra.mxu0 0.0
        %372 = vmatprep.subr.mxu0 0.0
        %373 = vmatpush1.xpose.msra.mxu0 0.0
        %v374 = vand.u32 %v258, 4294901760
        %v375 = vsub.f32 %v258, %v374
        %v376 = vand.u32 %v375, 4294901760
        %v377 = vsub.f32 %v375, %v376
        %v378 = vand.u32 %v377, 4294901760
        %379 = vmatprep.subr.mxu0 %v378
        %v380 = vand.u32 %v254, 4294901760
        %v381 = vsub.f32 %v254, %v380
        %v382 = vand.u32 %v381, 4294901760
        %v383 = vsub.f32 %v381, %v382
        %v384 = vand.u32 %v383, 4294901760
        %385 = vmatpush1.xpose.msra.mxu0 %v384
        %386 = vmatprep.subr.mxu0 0.0
        %387 = vmatpush2.xpose.msra.mxu0 0.0
        %388 = vmatprep.subr.mxu0 0.0
        %389 = vmatpush2.xpose.msra.mxu0 0.0
        %390 = vmatprep.subr.mxu0 0.0
        %391 = vmatpush2.xpose.msra.mxu0 0.0
        %392 = vmatprep.subr.mxu0 0.0
        %393 = vmatpush2.xpose.msra.mxu0 0.0
        %394 = vmatprep.subr.mxu0 0.0
        %395 = vmatpush2.xpose.msra.mxu0 0.0
        %396 = vmatprep.subr.mxu0 0.0
        %397 = vmatpush2.xpose.msra.mxu0 0.0
        %398 = vmatprep.subr.mxu0 0.0
        %399 = vmatpush2.xpose.msra.mxu0 0.0
        %400 = vmatprep.subr.mxu0 0.0
        %401 = vmatpush2.xpose.msra.mxu0 0.0
        %402 = vmatprep.subr.mxu0 0.0
        %403 = vmatpush2.xpose.msra.mxu0 0.0
        %404 = vmatprep.subr.mxu0 0.0
        %405 = vmatpush2.xpose.msra.mxu0 0.0
        %406 = vmatprep.subr.mxu0 0.0
        %407 = vmatpush2.xpose.msra.mxu0 0.0
        %408 = vmatprep.subr.mxu0 0.0
        %409 = vmatpush2.xpose.msra.mxu0 0.0
        %410 = vmatprep.subr.mxu0 0.0
        %411 = vmatpush2.xpose.msra.mxu0 0.0
        %412 = vmatprep.subr.mxu0 0.0
        %413 = vmatpush2.xpose.msra.mxu0 0.0
        %414 = vmatprep.subr.mxu0 0.0
        %415 = vmatpush2.xpose.msra.mxu0 0.0
        %416 = vmatprep.subr.mxu0 0.0
        %417 = vmatpush2.xpose.msra.mxu0 0.0
        %v418 = vand.u32 %v251, 4294901760
        %419 = vmatprep.mubr.f32.mxu0 %v418
        %v420 = vand.u32 %v250, 4294901760
        %421 = vmatmul.mubr.f32.gmra.mxu0 %v420
        %v422 = vpop.f32.mrf.mxu0
        %v423 = vadd.f32 %v341, %v422
        %v424 = vpop.f32.mrf.mxu0
        %425 = vdwg.mxu0
        %426 = vmatprep.subr.mxu0 0.0
        %427 = vmatpush1.xpose.msra.mxu0 0.0
        %428 = vmatprep.subr.mxu0 0.0
        %429 = vmatpush1.xpose.msra.mxu0 0.0
        %430 = vmatprep.subr.mxu0 0.0
        %431 = vmatpush1.xpose.msra.mxu0 0.0
        %432 = vmatprep.subr.mxu0 0.0
        %433 = vmatpush1.xpose.msra.mxu0 0.0
        %434 = vmatprep.subr.mxu0 0.0
        %435 = vmatpush1.xpose.msra.mxu0 0.0
        %436 = vmatprep.subr.mxu0 0.0
        %437 = vmatpush1.xpose.msra.mxu0 0.0
        %438 = vmatprep.subr.mxu0 0.0
        %439 = vmatpush1.xpose.msra.mxu0 0.0
        %440 = vmatprep.subr.mxu0 0.0
        %441 = vmatpush1.xpose.msra.mxu0 0.0
        %442 = vmatprep.subr.mxu0 0.0
        %443 = vmatpush1.xpose.msra.mxu0 0.0
        %444 = vmatprep.subr.mxu0 0.0
        %445 = vmatpush1.xpose.msra.mxu0 0.0
        %446 = vmatprep.subr.mxu0 0.0
        %447 = vmatpush1.xpose.msra.mxu0 0.0
        %448 = vmatprep.subr.mxu0 0.0
        %449 = vmatpush1.xpose.msra.mxu0 0.0
        %450 = vmatprep.subr.mxu0 0.0
        %451 = vmatpush1.xpose.msra.mxu0 0.0
        %452 = vmatprep.subr.mxu0 0.0
        %453 = vmatpush1.xpose.msra.mxu0 0.0
        %454 = vmatprep.subr.mxu0 0.0
        %455 = vmatpush1.xpose.msra.mxu0 0.0
        %v456 = vand.u32 %v258, 4294901760
        %v457 = vsub.f32 %v258, %v456
        %458 = vmatprep.subr.mxu0 %v457
        %v459 = vand.u32 %v254, 4294901760
        %v460 = vsub.f32 %v254, %v459
        %461 = vmatpush1.xpose.msra.mxu0 %v460
        %462 = vmatprep.subr.mxu0 0.0
        %463 = vmatpush2.xpose.msra.mxu0 0.0
        %464 = vmatprep.subr.mxu0 0.0
        %465 = vmatpush2.xpose.msra.mxu0 0.0
        %466 = vmatprep.subr.mxu0 0.0
        %467 = vmatpush2.xpose.msra.mxu0 0.0
        %468 = vmatprep.subr.mxu0 0.0
        %469 = vmatpush2.xpose.msra.mxu0 0.0
        %470 = vmatprep.subr.mxu0 0.0
        %471 = vmatpush2.xpose.msra.mxu0 0.0
        %472 = vmatprep.subr.mxu0 0.0
        %473 = vmatpush2.xpose.msra.mxu0 0.0
        %474 = vmatprep.subr.mxu0 0.0
        %475 = vmatpush2.xpose.msra.mxu0 0.0
        %476 = vmatprep.subr.mxu0 0.0
        %477 = vmatpush2.xpose.msra.mxu0 0.0
        %478 = vmatprep.subr.mxu0 0.0
        %479 = vmatpush2.xpose.msra.mxu0 0.0
        %480 = vmatprep.subr.mxu0 0.0
        %481 = vmatpush2.xpose.msra.mxu0 0.0
        %482 = vmatprep.subr.mxu0 0.0
        %483 = vmatpush2.xpose.msra.mxu0 0.0
        %484 = vmatprep.subr.mxu0 0.0
        %485 = vmatpush2.xpose.msra.mxu0 0.0
        %486 = vmatprep.subr.mxu0 0.0
        %487 = vmatpush2.xpose.msra.mxu0 0.0
        %488 = vmatprep.subr.mxu0 0.0
        %489 = vmatpush2.xpose.msra.mxu0 0.0
        %490 = vmatprep.subr.mxu0 0.0
        %491 = vmatpush2.xpose.msra.mxu0 0.0
        %492 = vmatprep.subr.mxu0 0.0
        %493 = vmatpush2.xpose.msra.mxu0 0.0
        %v494 = vand.u32 %v251, 4294901760
        %v495 = vsub.f32 %v251, %v494
        %496 = vmatprep.mubr.f32.mxu0 %v495
        %v497 = vand.u32 %v250, 4294901760
        %v498 = vsub.f32 %v250, %v497
        %499 = vmatmul.mubr.f32.gmra.mxu0 %v498
        %v500 = vpop.f32.mrf.mxu0
        %v501 = vadd.f32 %v423, %v500
        %v502 = vpop.f32.mrf.mxu0
        %503 = vdwg.mxu0
        %504 = vmatprep.subr.mxu0 0.0
        %505 = vmatpush1.xpose.msra.mxu0 0.0
        %506 = vmatprep.subr.mxu0 0.0
        %507 = vmatpush1.xpose.msra.mxu0 0.0
        %508 = vmatprep.subr.mxu0 0.0
        %509 = vmatpush1.xpose.msra.mxu0 0.0
        %510 = vmatprep.subr.mxu0 0.0
        %511 = vmatpush1.xpose.msra.mxu0 0.0
        %512 = vmatprep.subr.mxu0 0.0
        %513 = vmatpush1.xpose.msra.mxu0 0.0
        %514 = vmatprep.subr.mxu0 0.0
        %515 = vmatpush1.xpose.msra.mxu0 0.0
        %516 = vmatprep.subr.mxu0 0.0
        %517 = vmatpush1.xpose.msra.mxu0 0.0
        %518 = vmatprep.subr.mxu0 0.0
        %519 = vmatpush1.xpose.msra.mxu0 0.0
        %520 = vmatprep.subr.mxu0 0.0
        %521 = vmatpush1.xpose.msra.mxu0 0.0
        %522 = vmatprep.subr.mxu0 0.0
        %523 = vmatpush1.xpose.msra.mxu0 0.0
        %524 = vmatprep.subr.mxu0 0.0
        %525 = vmatpush1.xpose.msra.mxu0 0.0
        %526 = vmatprep.subr.mxu0 0.0
        %527 = vmatpush1.xpose.msra.mxu0 0.0
        %528 = vmatprep.subr.mxu0 0.0
        %529 = vmatpush1.xpose.msra.mxu0 0.0
        %530 = vmatprep.subr.mxu0 0.0
        %531 = vmatpush1.xpose.msra.mxu0 0.0
        %532 = vmatprep.subr.mxu0 0.0
        %533 = vmatpush1.xpose.msra.mxu0 0.0
        %v534 = vand.u32 %v258, 4294901760
        %535 = vmatprep.subr.mxu0 %v534
        %v536 = vand.u32 %v254, 4294901760
        %537 = vmatpush1.xpose.msra.mxu0 %v536
        %538 = vmatprep.subr.mxu0 0.0
        %539 = vmatpush2.xpose.msra.mxu0 0.0
        %540 = vmatprep.subr.mxu0 0.0
        %541 = vmatpush2.xpose.msra.mxu0 0.0
        %542 = vmatprep.subr.mxu0 0.0
        %543 = vmatpush2.xpose.msra.mxu0 0.0
        %544 = vmatprep.subr.mxu0 0.0
        %545 = vmatpush2.xpose.msra.mxu0 0.0
        %546 = vmatprep.subr.mxu0 0.0
        %547 = vmatpush2.xpose.msra.mxu0 0.0
        %548 = vmatprep.subr.mxu0 0.0
        %549 = vmatpush2.xpose.msra.mxu0 0.0
        %550 = vmatprep.subr.mxu0 0.0
        %551 = vmatpush2.xpose.msra.mxu0 0.0
        %552 = vmatprep.subr.mxu0 0.0
        %553 = vmatpush2.xpose.msra.mxu0 0.0
        %554 = vmatprep.subr.mxu0 0.0
        %555 = vmatpush2.xpose.msra.mxu0 0.0
        %556 = vmatprep.subr.mxu0 0.0
        %557 = vmatpush2.xpose.msra.mxu0 0.0
        %558 = vmatprep.subr.mxu0 0.0
        %559 = vmatpush2.xpose.msra.mxu0 0.0
        %560 = vmatprep.subr.mxu0 0.0
        %561 = vmatpush2.xpose.msra.mxu0 0.0
        %562 = vmatprep.subr.mxu0 0.0
        %563 = vmatpush2.xpose.msra.mxu0 0.0
        %564 = vmatprep.subr.mxu0 0.0
        %565 = vmatpush2.xpose.msra.mxu0 0.0
        %566 = vmatprep.subr.mxu0 0.0
        %567 = vmatpush2.xpose.msra.mxu0 0.0
        %568 = vmatprep.subr.mxu0 0.0
        %569 = vmatpush2.xpose.msra.mxu0 0.0
        %v570 = vand.u32 %v251, 4294901760
        %v571 = vsub.f32 %v251, %v570
        %v572 = vand.u32 %v571, 4294901760
        %573 = vmatprep.mubr.f32.mxu0 %v572
        %v574 = vand.u32 %v250, 4294901760
        %v575 = vsub.f32 %v250, %v574
        %v576 = vand.u32 %v575, 4294901760
        %577 = vmatmul.mubr.f32.gmra.mxu0 %v576
        %v578 = vpop.f32.mrf.mxu0
        %v579 = vadd.f32 %v501, %v578
        %v580 = vpop.f32.mrf.mxu0
        %581 = vdwg.mxu0
        %582 = vmatprep.subr.mxu0 0.0
        %583 = vmatpush1.xpose.msra.mxu0 0.0
        %584 = vmatprep.subr.mxu0 0.0
        %585 = vmatpush1.xpose.msra.mxu0 0.0
        %586 = vmatprep.subr.mxu0 0.0
        %587 = vmatpush1.xpose.msra.mxu0 0.0
        %588 = vmatprep.subr.mxu0 0.0
        %589 = vmatpush1.xpose.msra.mxu0 0.0
        %590 = vmatprep.subr.mxu0 0.0
        %591 = vmatpush1.xpose.msra.mxu0 0.0
        %592 = vmatprep.subr.mxu0 0.0
        %593 = vmatpush1.xpose.msra.mxu0 0.0
        %594 = vmatprep.subr.mxu0 0.0
        %595 = vmatpush1.xpose.msra.mxu0 0.0
        %596 = vmatprep.subr.mxu0 0.0
        %597 = vmatpush1.xpose.msra.mxu0 0.0
        %598 = vmatprep.subr.mxu0 0.0
        %599 = vmatpush1.xpose.msra.mxu0 0.0
        %600 = vmatprep.subr.mxu0 0.0
        %601 = vmatpush1.xpose.msra.mxu0 0.0
        %602 = vmatprep.subr.mxu0 0.0
        %603 = vmatpush1.xpose.msra.mxu0 0.0
        %604 = vmatprep.subr.mxu0 0.0
        %605 = vmatpush1.xpose.msra.mxu0 0.0
        %606 = vmatprep.subr.mxu0 0.0
        %607 = vmatpush1.xpose.msra.mxu0 0.0
        %608 = vmatprep.subr.mxu0 0.0
        %609 = vmatpush1.xpose.msra.mxu0 0.0
        %610 = vmatprep.subr.mxu0 0.0
        %611 = vmatpush1.xpose.msra.mxu0 0.0
        %v612 = vand.u32 %v258, 4294901760
        %v613 = vsub.f32 %v258, %v612
        %v614 = vand.u32 %v613, 4294901760
        %615 = vmatprep.subr.mxu0 %v614
        %v616 = vand.u32 %v254, 4294901760
        %v617 = vsub.f32 %v254, %v616
        %v618 = vand.u32 %v617, 4294901760
        %619 = vmatpush1.xpose.msra.mxu0 %v618
        %620 = vmatprep.subr.mxu0 0.0
        %621 = vmatpush2.xpose.msra.mxu0 0.0
        %622 = vmatprep.subr.mxu0 0.0
        %623 = vmatpush2.xpose.msra.mxu0 0.0
        %624 = vmatprep.subr.mxu0 0.0
        %625 = vmatpush2.xpose.msra.mxu0 0.0
        %626 = vmatprep.subr.mxu0 0.0
        %627 = vmatpush2.xpose.msra.mxu0 0.0
        %628 = vmatprep.subr.mxu0 0.0
        %629 = vmatpush2.xpose.msra.mxu0 0.0
        %630 = vmatprep.subr.mxu0 0.0
        %631 = vmatpush2.xpose.msra.mxu0 0.0
        %632 = vmatprep.subr.mxu0 0.0
        %633 = vmatpush2.xpose.msra.mxu0 0.0
        %634 = vmatprep.subr.mxu0 0.0
        %635 = vmatpush2.xpose.msra.mxu0 0.0
        %636 = vmatprep.subr.mxu0 0.0
        %637 = vmatpush2.xpose.msra.mxu0 0.0
        %638 = vmatprep.subr.mxu0 0.0
        %639 = vmatpush2.xpose.msra.mxu0 0.0
        %640 = vmatprep.subr.mxu0 0.0
        %641 = vmatpush2.xpose.msra.mxu0 0.0
        %642 = vmatprep.subr.mxu0 0.0
        %643 = vmatpush2.xpose.msra.mxu0 0.0
        %644 = vmatprep.subr.mxu0 0.0
        %645 = vmatpush2.xpose.msra.mxu0 0.0
        %646 = vmatprep.subr.mxu0 0.0
        %647 = vmatpush2.xpose.msra.mxu0 0.0
        %648 = vmatprep.subr.mxu0 0.0
        %649 = vmatpush2.xpose.msra.mxu0 0.0
        %650 = vmatprep.subr.mxu0 0.0
        %651 = vmatpush2.xpose.msra.mxu0 0.0
        %v652 = vand.u32 %v251, 4294901760
        %653 = vmatprep.mubr.f32.mxu0 %v652
        %v654 = vand.u32 %v250, 4294901760
        %655 = vmatmul.mubr.f32.gmra.mxu0 %v654
        %v656 = vpop.f32.mrf.mxu0
        %v657 = vadd.f32 %v579, %v656
        %v658 = vpop.f32.mrf.mxu0
        %659 = vdwg.mxu0
        %660 = vmatprep.subr.mxu0 0.0
        %661 = vmatpush1.xpose.msra.mxu0 0.0
        %662 = vmatprep.subr.mxu0 0.0
        %663 = vmatpush1.xpose.msra.mxu0 0.0
        %664 = vmatprep.subr.mxu0 0.0
        %665 = vmatpush1.xpose.msra.mxu0 0.0
        %666 = vmatprep.subr.mxu0 0.0
        %667 = vmatpush1.xpose.msra.mxu0 0.0
        %668 = vmatprep.subr.mxu0 0.0
        %669 = vmatpush1.xpose.msra.mxu0 0.0
        %670 = vmatprep.subr.mxu0 0.0
        %671 = vmatpush1.xpose.msra.mxu0 0.0
        %672 = vmatprep.subr.mxu0 0.0
        %673 = vmatpush1.xpose.msra.mxu0 0.0
        %674 = vmatprep.subr.mxu0 0.0
        %675 = vmatpush1.xpose.msra.mxu0 0.0
        %676 = vmatprep.subr.mxu0 0.0
        %677 = vmatpush1.xpose.msra.mxu0 0.0
        %678 = vmatprep.subr.mxu0 0.0
        %679 = vmatpush1.xpose.msra.mxu0 0.0
        %680 = vmatprep.subr.mxu0 0.0
        %681 = vmatpush1.xpose.msra.mxu0 0.0
        %682 = vmatprep.subr.mxu0 0.0
        %683 = vmatpush1.xpose.msra.mxu0 0.0
        %684 = vmatprep.subr.mxu0 0.0
        %685 = vmatpush1.xpose.msra.mxu0 0.0
        %686 = vmatprep.subr.mxu0 0.0
        %687 = vmatpush1.xpose.msra.mxu0 0.0
        %688 = vmatprep.subr.mxu0 0.0
        %689 = vmatpush1.xpose.msra.mxu0 0.0
        %v690 = vand.u32 %v258, 4294901760
        %691 = vmatprep.subr.mxu0 %v690
        %v692 = vand.u32 %v254, 4294901760
        %693 = vmatpush1.xpose.msra.mxu0 %v692
        %694 = vmatprep.subr.mxu0 0.0
        %695 = vmatpush2.xpose.msra.mxu0 0.0
        %696 = vmatprep.subr.mxu0 0.0
        %697 = vmatpush2.xpose.msra.mxu0 0.0
        %698 = vmatprep.subr.mxu0 0.0
        %699 = vmatpush2.xpose.msra.mxu0 0.0
        %700 = vmatprep.subr.mxu0 0.0
        %701 = vmatpush2.xpose.msra.mxu0 0.0
        %702 = vmatprep.subr.mxu0 0.0
        %703 = vmatpush2.xpose.msra.mxu0 0.0
        %704 = vmatprep.subr.mxu0 0.0
        %705 = vmatpush2.xpose.msra.mxu0 0.0
        %706 = vmatprep.subr.mxu0 0.0
        %707 = vmatpush2.xpose.msra.mxu0 0.0
        %708 = vmatprep.subr.mxu0 0.0
        %709 = vmatpush2.xpose.msra.mxu0 0.0
        %710 = vmatprep.subr.mxu0 0.0
        %711 = vmatpush2.xpose.msra.mxu0 0.0
        %712 = vmatprep.subr.mxu0 0.0
        %713 = vmatpush2.xpose.msra.mxu0 0.0
        %714 = vmatprep.subr.mxu0 0.0
        %715 = vmatpush2.xpose.msra.mxu0 0.0
        %716 = vmatprep.subr.mxu0 0.0
        %717 = vmatpush2.xpose.msra.mxu0 0.0
        %718 = vmatprep.subr.mxu0 0.0
        %719 = vmatpush2.xpose.msra.mxu0 0.0
        %720 = vmatprep.subr.mxu0 0.0
        %721 = vmatpush2.xpose.msra.mxu0 0.0
        %722 = vmatprep.subr.mxu0 0.0
        %723 = vmatpush2.xpose.msra.mxu0 0.0
        %724 = vmatprep.subr.mxu0 0.0
        %725 = vmatpush2.xpose.msra.mxu0 0.0
        %v726 = vand.u32 %v251, 4294901760
        %727 = vmatprep.mubr.f32.mxu0 %v726
        %v728 = vand.u32 %v250, 4294901760
        %729 = vmatmul.mubr.f32.gmra.mxu0 %v728
        %v730 = vpop.f32.mrf.mxu0
        %v731 = vadd.f32 %v657, %v730
        %v732 = vpop.f32.mrf.mxu0
        %733 = vdwg.mxu0
        %734 = vmatprep.subr.mxu0 0.0
        %735 = vmatpush1.xpose.msra.mxu0 0.0
        %736 = vmatprep.subr.mxu0 0.0
        %737 = vmatpush1.xpose.msra.mxu0 0.0
        %738 = vmatprep.subr.mxu0 0.0
        %739 = vmatpush1.xpose.msra.mxu0 0.0
        %740 = vmatprep.subr.mxu0 0.0
        %741 = vmatpush1.xpose.msra.mxu0 0.0
        %742 = vmatprep.subr.mxu0 0.0
        %743 = vmatpush1.xpose.msra.mxu0 0.0
        %744 = vmatprep.subr.mxu0 0.0
        %745 = vmatpush1.xpose.msra.mxu0 0.0
        %746 = vmatprep.subr.mxu0 0.0
        %747 = vmatpush1.xpose.msra.mxu0 0.0
        %748 = vmatprep.subr.mxu0 0.0
        %749 = vmatpush1.xpose.msra.mxu0 0.0
        %750 = vmatprep.subr.mxu0 0.0
        %751 = vmatpush1.xpose.msra.mxu0 0.0
        %752 = vmatprep.subr.mxu0 0.0
        %753 = vmatpush1.xpose.msra.mxu0 0.0
        %754 = vmatprep.subr.mxu0 0.0
        %755 = vmatpush1.xpose.msra.mxu0 0.0
        %756 = vmatprep.subr.mxu0 0.0
        %757 = vmatpush1.xpose.msra.mxu0 0.0
        %758 = vmatprep.subr.mxu0 0.0
        %759 = vmatpush1.xpose.msra.mxu0 0.0
        %760 = vmatprep.subr.mxu0 0.0
        %761 = vmatpush1.xpose.msra.mxu0 0.0
        %762 = vmatprep.subr.mxu0 0.0
        %763 = vmatpush1.xpose.msra.mxu0 0.0
        %v764 = vand.u32 %v259, 4294901760
        %765 = vmatprep.subr.mxu0 %v764
        %v766 = vand.u32 %v255, 4294901760
        %767 = vmatpush1.xpose.msra.mxu0 %v766
        %768 = vmatprep.subr.mxu0 0.0
        %769 = vmatpush2.xpose.msra.mxu0 0.0
        %770 = vmatprep.subr.mxu0 0.0
        %771 = vmatpush2.xpose.msra.mxu0 0.0
        %772 = vmatprep.subr.mxu0 0.0
        %773 = vmatpush2.xpose.msra.mxu0 0.0
        %774 = vmatprep.subr.mxu0 0.0
        %775 = vmatpush2.xpose.msra.mxu0 0.0
        %776 = vmatprep.subr.mxu0 0.0
        %777 = vmatpush2.xpose.msra.mxu0 0.0
        %778 = vmatprep.subr.mxu0 0.0
        %779 = vmatpush2.xpose.msra.mxu0 0.0
        %780 = vmatprep.subr.mxu0 0.0
        %781 = vmatpush2.xpose.msra.mxu0 0.0
        %782 = vmatprep.subr.mxu0 0.0
        %783 = vmatpush2.xpose.msra.mxu0 0.0
        %784 = vmatprep.subr.mxu0 0.0
        %785 = vmatpush2.xpose.msra.mxu0 0.0
        %786 = vmatprep.subr.mxu0 0.0
        %787 = vmatpush2.xpose.msra.mxu0 0.0
        %788 = vmatprep.subr.mxu0 0.0
        %789 = vmatpush2.xpose.msra.mxu0 0.0
        %790 = vmatprep.subr.mxu0 0.0
        %791 = vmatpush2.xpose.msra.mxu0 0.0
        %792 = vmatprep.subr.mxu0 0.0
        %793 = vmatpush2.xpose.msra.mxu0 0.0
        %794 = vmatprep.subr.mxu0 0.0
        %795 = vmatpush2.xpose.msra.mxu0 0.0
        %796 = vmatprep.subr.mxu0 0.0
        %797 = vmatpush2.xpose.msra.mxu0 0.0
        %798 = vmatprep.subr.mxu0 0.0
        %799 = vmatpush2.xpose.msra.mxu0 0.0
        %v800 = vand.u32 %v253, 4294901760
        %v801 = vsub.f32 %v253, %v800
        %v802 = vand.u32 %v801, 4294901760
        %v803 = vsub.f32 %v801, %v802
        %v804 = vand.u32 %v803, 4294901760
        %805 = vmatprep.mubr.f32.mxu0 %v804
        %v806 = vand.u32 %v252, 4294901760
        %v807 = vsub.f32 %v252, %v806
        %v808 = vand.u32 %v807, 4294901760
        %v809 = vsub.f32 %v807, %v808
        %v810 = vand.u32 %v809, 4294901760
        %811 = vmatmul.mubr.f32.gmra.mxu0 %v810
        %v812 = vpop.f32.mrf.mxu0
        %v813 = vadd.f32 %v731, %v812
        %v814 = vpop.f32.mrf.mxu0
        %815 = vdwg.mxu0
        %816 = vmatprep.subr.mxu0 0.0
        %817 = vmatpush1.xpose.msra.mxu0 0.0
        %818 = vmatprep.subr.mxu0 0.0
        %819 = vmatpush1.xpose.msra.mxu0 0.0
        %820 = vmatprep.subr.mxu0 0.0
        %821 = vmatpush1.xpose.msra.mxu0 0.0
        %822 = vmatprep.subr.mxu0 0.0
        %823 = vmatpush1.xpose.msra.mxu0 0.0
        %824 = vmatprep.subr.mxu0 0.0
        %825 = vmatpush1.xpose.msra.mxu0 0.0
        %826 = vmatprep.subr.mxu0 0.0
        %827 = vmatpush1.xpose.msra.mxu0 0.0
        %828 = vmatprep.subr.mxu0 0.0
        %829 = vmatpush1.xpose.msra.mxu0 0.0
        %830 = vmatprep.subr.mxu0 0.0
        %831 = vmatpush1.xpose.msra.mxu0 0.0
        %832 = vmatprep.subr.mxu0 0.0
        %833 = vmatpush1.xpose.msra.mxu0 0.0
        %834 = vmatprep.subr.mxu0 0.0
        %835 = vmatpush1.xpose.msra.mxu0 0.0
        %836 = vmatprep.subr.mxu0 0.0
        %837 = vmatpush1.xpose.msra.mxu0 0.0
        %838 = vmatprep.subr.mxu0 0.0
        %839 = vmatpush1.xpose.msra.mxu0 0.0
        %840 = vmatprep.subr.mxu0 0.0
        %841 = vmatpush1.xpose.msra.mxu0 0.0
        %842 = vmatprep.subr.mxu0 0.0
        %843 = vmatpush1.xpose.msra.mxu0 0.0
        %844 = vmatprep.subr.mxu0 0.0
        %845 = vmatpush1.xpose.msra.mxu0 0.0
        %v846 = vand.u32 %v259, 4294901760
        %v847 = vsub.f32 %v259, %v846
        %v848 = vand.u32 %v847, 4294901760
        %v849 = vsub.f32 %v847, %v848
        %v850 = vand.u32 %v849, 4294901760
        %851 = vmatprep.subr.mxu0 %v850
        %v852 = vand.u32 %v255, 4294901760
        %v853 = vsub.f32 %v255, %v852
        %v854 = vand.u32 %v853, 4294901760
        %v855 = vsub.f32 %v853, %v854
        %v856 = vand.u32 %v855, 4294901760
        %857 = vmatpush1.xpose.msra.mxu0 %v856
        %858 = vmatprep.subr.mxu0 0.0
        %859 = vmatpush2.xpose.msra.mxu0 0.0
        %860 = vmatprep.subr.mxu0 0.0
        %861 = vmatpush2.xpose.msra.mxu0 0.0
        %862 = vmatprep.subr.mxu0 0.0
        %863 = vmatpush2.xpose.msra.mxu0 0.0
        %864 = vmatprep.subr.mxu0 0.0
        %865 = vmatpush2.xpose.msra.mxu0 0.0
        %866 = vmatprep.subr.mxu0 0.0
        %867 = vmatpush2.xpose.msra.mxu0 0.0
        %868 = vmatprep.subr.mxu0 0.0
        %869 = vmatpush2.xpose.msra.mxu0 0.0
        %870 = vmatprep.subr.mxu0 0.0
        %871 = vmatpush2.xpose.msra.mxu0 0.0
        %872 = vmatprep.subr.mxu0 0.0
        %873 = vmatpush2.xpose.msra.mxu0 0.0
        %874 = vmatprep.subr.mxu0 0.0
        %875 = vmatpush2.xpose.msra.mxu0 0.0
        %876 = vmatprep.subr.mxu0 0.0
        %877 = vmatpush2.xpose.msra.mxu0 0.0
        %878 = vmatprep.subr.mxu0 0.0
        %879 = vmatpush2.xpose.msra.mxu0 0.0
        %880 = vmatprep.subr.mxu0 0.0
        %881 = vmatpush2.xpose.msra.mxu0 0.0
        %882 = vmatprep.subr.mxu0 0.0
        %883 = vmatpush2.xpose.msra.mxu0 0.0
        %884 = vmatprep.subr.mxu0 0.0
        %885 = vmatpush2.xpose.msra.mxu0 0.0
        %886 = vmatprep.subr.mxu0 0.0
        %887 = vmatpush2.xpose.msra.mxu0 0.0
        %888 = vmatprep.subr.mxu0 0.0
        %889 = vmatpush2.xpose.msra.mxu0 0.0
        %v890 = vand.u32 %v253, 4294901760
        %891 = vmatprep.mubr.f32.mxu0 %v890
        %v892 = vand.u32 %v252, 4294901760
        %893 = vmatmul.mubr.f32.gmra.mxu0 %v892
        %v894 = vpop.f32.mrf.mxu0
        %v895 = vadd.f32 %v813, %v894
        %v896 = vpop.f32.mrf.mxu0
        %897 = vdwg.mxu0
        %898 = vmatprep.subr.mxu0 0.0
        %899 = vmatpush1.xpose.msra.mxu0 0.0
        %900 = vmatprep.subr.mxu0 0.0
        %901 = vmatpush1.xpose.msra.mxu0 0.0
        %902 = vmatprep.subr.mxu0 0.0
        %903 = vmatpush1.xpose.msra.mxu0 0.0
        %904 = vmatprep.subr.mxu0 0.0
        %905 = vmatpush1.xpose.msra.mxu0 0.0
        %906 = vmatprep.subr.mxu0 0.0
        %907 = vmatpush1.xpose.msra.mxu0 0.0
        %908 = vmatprep.subr.mxu0 0.0
        %909 = vmatpush1.xpose.msra.mxu0 0.0
        %910 = vmatprep.subr.mxu0 0.0
        %911 = vmatpush1.xpose.msra.mxu0 0.0
        %912 = vmatprep.subr.mxu0 0.0
        %913 = vmatpush1.xpose.msra.mxu0 0.0
        %914 = vmatprep.subr.mxu0 0.0
        %915 = vmatpush1.xpose.msra.mxu0 0.0
        %916 = vmatprep.subr.mxu0 0.0
        %917 = vmatpush1.xpose.msra.mxu0 0.0
        %918 = vmatprep.subr.mxu0 0.0
        %919 = vmatpush1.xpose.msra.mxu0 0.0
        %920 = vmatprep.subr.mxu0 0.0
        %921 = vmatpush1.xpose.msra.mxu0 0.0
        %922 = vmatprep.subr.mxu0 0.0
        %923 = vmatpush1.xpose.msra.mxu0 0.0
        %924 = vmatprep.subr.mxu0 0.0
        %925 = vmatpush1.xpose.msra.mxu0 0.0
        %926 = vmatprep.subr.mxu0 0.0
        %927 = vmatpush1.xpose.msra.mxu0 0.0
        %v928 = vand.u32 %v259, 4294901760
        %v929 = vsub.f32 %v259, %v928
        %930 = vmatprep.subr.mxu0 %v929
        %v931 = vand.u32 %v255, 4294901760
        %v932 = vsub.f32 %v255, %v931
        %933 = vmatpush1.xpose.msra.mxu0 %v932
        %934 = vmatprep.subr.mxu0 0.0
        %935 = vmatpush2.xpose.msra.mxu0 0.0
        %936 = vmatprep.subr.mxu0 0.0
        %937 = vmatpush2.xpose.msra.mxu0 0.0
        %938 = vmatprep.subr.mxu0 0.0
        %939 = vmatpush2.xpose.msra.mxu0 0.0
        %940 = vmatprep.subr.mxu0 0.0
        %941 = vmatpush2.xpose.msra.mxu0 0.0
        %942 = vmatprep.subr.mxu0 0.0
        %943 = vmatpush2.xpose.msra.mxu0 0.0
        %944 = vmatprep.subr.mxu0 0.0
        %945 = vmatpush2.xpose.msra.mxu0 0.0
        %946 = vmatprep.subr.mxu0 0.0
        %947 = vmatpush2.xpose.msra.mxu0 0.0
        %948 = vmatprep.subr.mxu0 0.0
        %949 = vmatpush2.xpose.msra.mxu0 0.0
        %950 = vmatprep.subr.mxu0 0.0
        %951 = vmatpush2.xpose.msra.mxu0 0.0
        %952 = vmatprep.subr.mxu0 0.0
        %953 = vmatpush2.xpose.msra.mxu0 0.0
        %954 = vmatprep.subr.mxu0 0.0
        %955 = vmatpush2.xpose.msra.mxu0 0.0
        %956 = vmatprep.subr.mxu0 0.0
        %957 = vmatpush2.xpose.msra.mxu0 0.0
        %958 = vmatprep.subr.mxu0 0.0
        %959 = vmatpush2.xpose.msra.mxu0 0.0
        %960 = vmatprep.subr.mxu0 0.0
        %961 = vmatpush2.xpose.msra.mxu0 0.0
        %962 = vmatprep.subr.mxu0 0.0
        %963 = vmatpush2.xpose.msra.mxu0 0.0
        %964 = vmatprep.subr.mxu0 0.0
        %965 = vmatpush2.xpose.msra.mxu0 0.0
        %v966 = vand.u32 %v253, 4294901760
        %v967 = vsub.f32 %v253, %v966
        %968 = vmatprep.mubr.f32.mxu0 %v967
        %v969 = vand.u32 %v252, 4294901760
        %v970 = vsub.f32 %v252, %v969
        %971 = vmatmul.mubr.f32.gmra.mxu0 %v970
        %v972 = vpop.f32.mrf.mxu0
        %v973 = vadd.f32 %v895, %v972
        %v974 = vpop.f32.mrf.mxu0
        %975 = vdwg.mxu0
        %976 = vmatprep.subr.mxu0 0.0
        %977 = vmatpush1.xpose.msra.mxu0 0.0
        %978 = vmatprep.subr.mxu0 0.0
        %979 = vmatpush1.xpose.msra.mxu0 0.0
        %980 = vmatprep.subr.mxu0 0.0
        %981 = vmatpush1.xpose.msra.mxu0 0.0
        %982 = vmatprep.subr.mxu0 0.0
        %983 = vmatpush1.xpose.msra.mxu0 0.0
        %984 = vmatprep.subr.mxu0 0.0
        %985 = vmatpush1.xpose.msra.mxu0 0.0
        %986 = vmatprep.subr.mxu0 0.0
        %987 = vmatpush1.xpose.msra.mxu0 0.0
        %988 = vmatprep.subr.mxu0 0.0
        %989 = vmatpush1.xpose.msra.mxu0 0.0
        %990 = vmatprep.subr.mxu0 0.0
        %991 = vmatpush1.xpose.msra.mxu0 0.0
        %992 = vmatprep.subr.mxu0 0.0
        %993 = vmatpush1.xpose.msra.mxu0 0.0
        %994 = vmatprep.subr.mxu0 0.0
        %995 = vmatpush1.xpose.msra.mxu0 0.0
        %996 = vmatprep.subr.mxu0 0.0
        %997 = vmatpush1.xpose.msra.mxu0 0.0
        %998 = vmatprep.subr.mxu0 0.0
        %999 = vmatpush1.xpose.msra.mxu0 0.0
        %1000 = vmatprep.subr.mxu0 0.0
        %1001 = vmatpush1.xpose.msra.mxu0 0.0
        %1002 = vmatprep.subr.mxu0 0.0
        %1003 = vmatpush1.xpose.msra.mxu0 0.0
        %1004 = vmatprep.subr.mxu0 0.0
        %1005 = vmatpush1.xpose.msra.mxu0 0.0
        %v1006 = vand.u32 %v259, 4294901760
        %1007 = vmatprep.subr.mxu0 %v1006
        %v1008 = vand.u32 %v255, 4294901760
        %1009 = vmatpush1.xpose.msra.mxu0 %v1008
        %1010 = vmatprep.subr.mxu0 0.0
        %1011 = vmatpush2.xpose.msra.mxu0 0.0
        %1012 = vmatprep.subr.mxu0 0.0
        %1013 = vmatpush2.xpose.msra.mxu0 0.0
        %1014 = vmatprep.subr.mxu0 0.0
        %1015 = vmatpush2.xpose.msra.mxu0 0.0
        %1016 = vmatprep.subr.mxu0 0.0
        %1017 = vmatpush2.xpose.msra.mxu0 0.0
        %1018 = vmatprep.subr.mxu0 0.0
        %1019 = vmatpush2.xpose.msra.mxu0 0.0
        %1020 = vmatprep.subr.mxu0 0.0
        %1021 = vmatpush2.xpose.msra.mxu0 0.0
        %1022 = vmatprep.subr.mxu0 0.0
        %1023 = vmatpush2.xpose.msra.mxu0 0.0
        %1024 = vmatprep.subr.mxu0 0.0
        %1025 = vmatpush2.xpose.msra.mxu0 0.0
        %1026 = vmatprep.subr.mxu0 0.0
        %1027 = vmatpush2.xpose.msra.mxu0 0.0
        %1028 = vmatprep.subr.mxu0 0.0
        %1029 = vmatpush2.xpose.msra.mxu0 0.0
        %1030 = vmatprep.subr.mxu0 0.0
        %1031 = vmatpush2.xpose.msra.mxu0 0.0
        %1032 = vmatprep.subr.mxu0 0.0
        %1033 = vmatpush2.xpose.msra.mxu0 0.0
        %1034 = vmatprep.subr.mxu0 0.0
        %1035 = vmatpush2.xpose.msra.mxu0 0.0
        %1036 = vmatprep.subr.mxu0 0.0
        %1037 = vmatpush2.xpose.msra.mxu0 0.0
        %1038 = vmatprep.subr.mxu0 0.0
        %1039 = vmatpush2.xpose.msra.mxu0 0.0
        %1040 = vmatprep.subr.mxu0 0.0
        %1041 = vmatpush2.xpose.msra.mxu0 0.0
        %v1042 = vand.u32 %v253, 4294901760
        %v1043 = vsub.f32 %v253, %v1042
        %v1044 = vand.u32 %v1043, 4294901760
        %1045 = vmatprep.mubr.f32.mxu0 %v1044
        %v1046 = vand.u32 %v252, 4294901760
        %v1047 = vsub.f32 %v252, %v1046
        %v1048 = vand.u32 %v1047, 4294901760
        %1049 = vmatmul.mubr.f32.gmra.mxu0 %v1048
        %v1050 = vpop.f32.mrf.mxu0
        %v1051 = vadd.f32 %v973, %v1050
        %v1052 = vpop.f32.mrf.mxu0
        %1053 = vdwg.mxu0
        %1054 = vmatprep.subr.mxu0 0.0
        %1055 = vmatpush1.xpose.msra.mxu0 0.0
        %1056 = vmatprep.subr.mxu0 0.0
        %1057 = vmatpush1.xpose.msra.mxu0 0.0
        %1058 = vmatprep.subr.mxu0 0.0
        %1059 = vmatpush1.xpose.msra.mxu0 0.0
        %1060 = vmatprep.subr.mxu0 0.0
        %1061 = vmatpush1.xpose.msra.mxu0 0.0
        %1062 = vmatprep.subr.mxu0 0.0
        %1063 = vmatpush1.xpose.msra.mxu0 0.0
        %1064 = vmatprep.subr.mxu0 0.0
        %1065 = vmatpush1.xpose.msra.mxu0 0.0
        %1066 = vmatprep.subr.mxu0 0.0
        %1067 = vmatpush1.xpose.msra.mxu0 0.0
        %1068 = vmatprep.subr.mxu0 0.0
        %1069 = vmatpush1.xpose.msra.mxu0 0.0
        %1070 = vmatprep.subr.mxu0 0.0
        %1071 = vmatpush1.xpose.msra.mxu0 0.0
        %1072 = vmatprep.subr.mxu0 0.0
        %1073 = vmatpush1.xpose.msra.mxu0 0.0
        %1074 = vmatprep.subr.mxu0 0.0
        %1075 = vmatpush1.xpose.msra.mxu0 0.0
        %1076 = vmatprep.subr.mxu0 0.0
        %1077 = vmatpush1.xpose.msra.mxu0 0.0
        %1078 = vmatprep.subr.mxu0 0.0
        %1079 = vmatpush1.xpose.msra.mxu0 0.0
        %1080 = vmatprep.subr.mxu0 0.0
        %1081 = vmatpush1.xpose.msra.mxu0 0.0
        %1082 = vmatprep.subr.mxu0 0.0
        %1083 = vmatpush1.xpose.msra.mxu0 0.0
        %v1084 = vand.u32 %v259, 4294901760
        %v1085 = vsub.f32 %v259, %v1084
        %v1086 = vand.u32 %v1085, 4294901760
        %1087 = vmatprep.subr.mxu0 %v1086
        %v1088 = vand.u32 %v255, 4294901760
        %v1089 = vsub.f32 %v255, %v1088
        %v1090 = vand.u32 %v1089, 4294901760
        %1091 = vmatpush1.xpose.msra.mxu0 %v1090
        %1092 = vmatprep.subr.mxu0 0.0
        %1093 = vmatpush2.xpose.msra.mxu0 0.0
        %1094 = vmatprep.subr.mxu0 0.0
        %1095 = vmatpush2.xpose.msra.mxu0 0.0
        %1096 = vmatprep.subr.mxu0 0.0
        %1097 = vmatpush2.xpose.msra.mxu0 0.0
        %1098 = vmatprep.subr.mxu0 0.0
        %1099 = vmatpush2.xpose.msra.mxu0 0.0
        %1100 = vmatprep.subr.mxu0 0.0
        %1101 = vmatpush2.xpose.msra.mxu0 0.0
        %1102 = vmatprep.subr.mxu0 0.0
        %1103 = vmatpush2.xpose.msra.mxu0 0.0
        %1104 = vmatprep.subr.mxu0 0.0
        %1105 = vmatpush2.xpose.msra.mxu0 0.0
        %1106 = vmatprep.subr.mxu0 0.0
        %1107 = vmatpush2.xpose.msra.mxu0 0.0
        %1108 = vmatprep.subr.mxu0 0.0
        %1109 = vmatpush2.xpose.msra.mxu0 0.0
        %1110 = vmatprep.subr.mxu0 0.0
        %1111 = vmatpush2.xpose.msra.mxu0 0.0
        %1112 = vmatprep.subr.mxu0 0.0
        %1113 = vmatpush2.xpose.msra.mxu0 0.0
        %1114 = vmatprep.subr.mxu0 0.0
        %1115 = vmatpush2.xpose.msra.mxu0 0.0
        %1116 = vmatprep.subr.mxu0 0.0
        %1117 = vmatpush2.xpose.msra.mxu0 0.0
        %1118 = vmatprep.subr.mxu0 0.0
        %1119 = vmatpush2.xpose.msra.mxu0 0.0
        %1120 = vmatprep.subr.mxu0 0.0
        %1121 = vmatpush2.xpose.msra.mxu0 0.0
        %1122 = vmatprep.subr.mxu0 0.0
        %1123 = vmatpush2.xpose.msra.mxu0 0.0
        %v1124 = vand.u32 %v253, 4294901760
        %1125 = vmatprep.mubr.f32.mxu0 %v1124
        %v1126 = vand.u32 %v252, 4294901760
        %1127 = vmatmul.mubr.f32.gmra.mxu0 %v1126
        %v1128 = vpop.f32.mrf.mxu0
        %v1129 = vadd.f32 %v1051, %v1128
        %v1130 = vpop.f32.mrf.mxu0
        %1131 = vdwg.mxu0
        %1132 = vmatprep.subr.mxu0 0.0
        %1133 = vmatpush1.xpose.msra.mxu0 0.0
        %1134 = vmatprep.subr.mxu0 0.0
        %1135 = vmatpush1.xpose.msra.mxu0 0.0
        %1136 = vmatprep.subr.mxu0 0.0
        %1137 = vmatpush1.xpose.msra.mxu0 0.0
        %1138 = vmatprep.subr.mxu0 0.0
        %1139 = vmatpush1.xpose.msra.mxu0 0.0
        %1140 = vmatprep.subr.mxu0 0.0
        %1141 = vmatpush1.xpose.msra.mxu0 0.0
        %1142 = vmatprep.subr.mxu0 0.0
        %1143 = vmatpush1.xpose.msra.mxu0 0.0
        %1144 = vmatprep.subr.mxu0 0.0
        %1145 = vmatpush1.xpose.msra.mxu0 0.0
        %1146 = vmatprep.subr.mxu0 0.0
        %1147 = vmatpush1.xpose.msra.mxu0 0.0
        %1148 = vmatprep.subr.mxu0 0.0
        %1149 = vmatpush1.xpose.msra.mxu0 0.0
        %1150 = vmatprep.subr.mxu0 0.0
        %1151 = vmatpush1.xpose.msra.mxu0 0.0
        %1152 = vmatprep.subr.mxu0 0.0
        %1153 = vmatpush1.xpose.msra.mxu0 0.0
        %1154 = vmatprep.subr.mxu0 0.0
        %1155 = vmatpush1.xpose.msra.mxu0 0.0
        %1156 = vmatprep.subr.mxu0 0.0
        %1157 = vmatpush1.xpose.msra.mxu0 0.0
        %1158 = vmatprep.subr.mxu0 0.0
        %1159 = vmatpush1.xpose.msra.mxu0 0.0
        %1160 = vmatprep.subr.mxu0 0.0
        %1161 = vmatpush1.xpose.msra.mxu0 0.0
        %v1162 = vand.u32 %v259, 4294901760
        %1163 = vmatprep.subr.mxu0 %v1162
        %v1164 = vand.u32 %v255, 4294901760
        %1165 = vmatpush1.xpose.msra.mxu0 %v1164
        %1166 = vmatprep.subr.mxu0 0.0
        %1167 = vmatpush2.xpose.msra.mxu0 0.0
        %1168 = vmatprep.subr.mxu0 0.0
        %1169 = vmatpush2.xpose.msra.mxu0 0.0
        %1170 = vmatprep.subr.mxu0 0.0
        %1171 = vmatpush2.xpose.msra.mxu0 0.0
        %1172 = vmatprep.subr.mxu0 0.0
        %1173 = vmatpush2.xpose.msra.mxu0 0.0
        %1174 = vmatprep.subr.mxu0 0.0
        %1175 = vmatpush2.xpose.msra.mxu0 0.0
        %1176 = vmatprep.subr.mxu0 0.0
        %1177 = vmatpush2.xpose.msra.mxu0 0.0
        %1178 = vmatprep.subr.mxu0 0.0
        %1179 = vmatpush2.xpose.msra.mxu0 0.0
        %1180 = vmatprep.subr.mxu0 0.0
        %1181 = vmatpush2.xpose.msra.mxu0 0.0
        %1182 = vmatprep.subr.mxu0 0.0
        %1183 = vmatpush2.xpose.msra.mxu0 0.0
        %1184 = vmatprep.subr.mxu0 0.0
        %1185 = vmatpush2.xpose.msra.mxu0 0.0
        %1186 = vmatprep.subr.mxu0 0.0
        %1187 = vmatpush2.xpose.msra.mxu0 0.0
        %1188 = vmatprep.subr.mxu0 0.0
        %1189 = vmatpush2.xpose.msra.mxu0 0.0
        %1190 = vmatprep.subr.mxu0 0.0
        %1191 = vmatpush2.xpose.msra.mxu0 0.0
        %1192 = vmatprep.subr.mxu0 0.0
        %1193 = vmatpush2.xpose.msra.mxu0 0.0
        %1194 = vmatprep.subr.mxu0 0.0
        %1195 = vmatpush2.xpose.msra.mxu0 0.0
        %1196 = vmatprep.subr.mxu0 0.0
        %1197 = vmatpush2.xpose.msra.mxu0 0.0
        %v1198 = vand.u32 %v253, 4294901760
        %1199 = vmatprep.mubr.f32.mxu0 %v1198
        %v1200 = vand.u32 %v252, 4294901760
        %1201 = vmatmul.mubr.f32.gmra.mxu0 %v1200
        %v1202 = vpop.f32.mrf.mxu0
        %v1203 = vadd.f32 %v1129, %v1202
        %v1204 = vpop.f32.mrf.mxu0
        %1205 = vdwg.mxu0
        %v1206 = vadd.f32 %v249, %v1203
        %vm1207 = vcmask 31744
        %1208 = vst.msk [vmem:[#allocation2] sm:$0xff] %vm1207, %v1206
        %p1209 = scmp.eq.s32.totalorder %s25, 1
        // Predicated region
        $region45: #{tpu_custom_call.1} parent=31 // pred_check
          %p1210 = pneg %p1209
        $region46: #{tpu_custom_call.1} parent=31 // pred_check_branch
          %1212 = sbr.rel (%p1210) target = $region48
        $region47: #{tpu_custom_call.1} parent=31 // pred_region
          %v1213 = vld [vmem:[#allocation2] sm:$0xff]
          %v1214 = vmul.f32 %v1213, 2.0
          %v1215 = vld [vmem:[%s2] sm:$0x1]
          %v1217 = vlaneseq
          %v1218 = vshrl.u32 %v1217, 7
          %v1219 = vsub.s32 0, %v1218
          %v1220 = vrot.slane %v1215, %v1219
          %v1222 = vsub.f32 %v1214, %v1220
          %v1223 = vsel %vm1207, %v1222, -inf
          %1224 = vmax.xlane.f32.xlu0 %v1223
          %v1225 = vpop.xlane.xlu0 %1224
          %v1226 = vsub.f32 %v1222, %v1225
          %v1227 = vmul.f32 %v1226, 1.442695
          %v1228 = vpow.pop %v1227
          %v1229 = vsel %vm1207, %v1228, 0.0
          %1230 = vadd.xlane.f32.xlu0 %v1229
          %v1231 = vpop.xlane.xlu0 %1230
          %v1232 = vrcp.pop %v1231
          %v1233 = vmul.f32 %v1228, %v1232
          %1234 = vst.msk [vmem:[%s242] sm:$0xff] %vm1207, %v1233
        $region48: #{tpu_custom_call.1} parent=31 // pred_fallthru
          _
        %p1235 = scmp.lt.s32.totalorder %s24, 1
        %s1236 = scalar_select %p1235, %s24, 1
        %s1237 = smul.addr %s1236, 8
        %s1238 = scalar_lea.vmem %s3, %s1237
        // Predicated region
        $region49: #{tpu_custom_call.1} parent=31 // pred_check
          %p1239 = pneg %p125
        $region50: #{tpu_custom_call.1} parent=31 // pred_check_branch
          %1241 = sbr.rel (%p1239) target = $region52
        $region51: #{tpu_custom_call.1} parent=31 // pred_region
          _
        $region52: #{tpu_custom_call.1} parent=31 // pred_fallthru
          _
      $region32: #{tpu_custom_call.1} parent=5 // pred_fallthru
        _
      %p1242 = scmp.le.s32.totalorder 2, %s15
      // Predicated region
      $region53: #{tpu_custom_call.1} parent=5 // pred_check
        %p1243 = pneg %p1242
      $region54: #{tpu_custom_call.1} parent=5 // pred_check_branch
        %1245 = sbr.rel (%p1243) target = $region56
      $region55: #{tpu_custom_call.1} parent=5 // pred_region
        %s1246 = ssub.s32 %s15, 2
        // Predicated region
        $region57: #{tpu_custom_call.1} parent=55 // pred_check
          %p1247 = pneg %p131
        $region58: #{tpu_custom_call.1} parent=55 // pred_check_branch
          %1249 = sbr.rel (%p1247) target = $region60
        $region59: #{tpu_custom_call.1} parent=55 // pred_region
          %p1250 = scmp.lt.s32.totalorder %s26, 1
          %s1251 = scalar_select %p1250, %s26, 1
          %s1252 = smul.addr %s1251, 8
          %s1253 = scalar_lea.vmem %s3, %s1252
        $region60: #{tpu_custom_call.1} parent=55 // pred_fallthru
          _
      $region56: #{tpu_custom_call.1} parent=5 // pred_fallthru
        _
    $region6: #{tpu_custom_call.1} parent=1 // loop_footer
      %s19 = sadd.s32 1, %s15
    $region7: #{tpu_custom_call.1} parent=1 // loop_footer_branch
      %14 = sbr.rel target = $region3
    $region8: #{tpu_custom_call.1} parent=1 // loop_exit
      _
    %1254 = vsyncpa [#allocation4], 1
    %s1255 = scalar_lea.sflag [#allocation4], 1
    %1256 = vsyncpa %s1255, 1
    %1257 = vsyncpa [#allocation6], 1
    %s1258 = scalar_lea.sflag [#allocation6], 1
    %1259 = vsyncpa %s1258, 1

</llo_original>
